<compile_context>
chip_gen: v7x
topology: tpu7x:2x2x1
jax: 0.10.0
libtpu: 0.0.40
codegen_flags: <defaults>
</compile_context>

<pallas_src>
import jax
import jax.numpy as jnp
from jax.experimental import pallas as pl
from jax.experimental.pallas import tpu as pltpu

_LANES = 128
_SUBLANES = 8


def _round_up(a, b):
    return ((a + b - 1) // b) * b


def _vmem_cap_bytes():
    """Physical VMEM of the current chip with ~15% headroom for compiler scratch."""
    try:
        cap = int(pltpu.get_tpu_info().vmem_capacity_bytes)
    except Exception:
        cap = 64 * 1024 * 1024  # conservative (v7x per-TC)
    return int(cap * 0.85)


# ------------------------------ kernels ------------------------------------


def _make_packed_kernel():
    """Features [x^1 .. x^{order-1}] are prebuilt in the wrapper: one MXU dot."""

    def kernel(f_ref, c_ref, b_ref, o_ref):
        y = jnp.dot(f_ref[...], c_ref[...], preferred_element_type=jnp.float32)
        o_ref[...] = (y + b_ref[...]).astype(o_ref.dtype)

    return kernel


def _make_slab_kernel(n_pows, i_pad, use_bf16):
    """Per-power dot against a static 128-aligned weight slab; f32 accumulation."""

    def kernel(x_ref, c_ref, b_ref, o_ref):
        x = x_ref[...].astype(jnp.float32)          # power chain stays f32
        acc = jnp.zeros(o_ref.shape, jnp.float32)
        p = x
        for k in range(n_pows):                      # x^1 .. x^{order-1}
            if k > 0:
                p = p * x                            # cheap VPU mul, hidden under MXU
            op = p.astype(jnp.bfloat16) if use_bf16 else p
            acc = acc + jnp.dot(op, c_ref[k * i_pad:(k + 1) * i_pad, :],
                                preferred_element_type=jnp.float32)
        o_ref[...] = (acc + b_ref[...]).astype(o_ref.dtype)

    return kernel


# --------------------------- parameter prep --------------------------------


def prepare_taylor_kan_params(coeffs, bias=None, *, addbias=True, use_bf16=False):
    """One-time weight re-layout; kept OUT of the per-call forward path.

    coeffs: (out_dim, input_dim, order)  [PyTorch layout]
    bias:   (1, out_dim) / (out_dim,) / None
    """
    out_dim, input_dim, order = coeffs.shape
    o_pad = _round_up(out_dim, _LANES)
    n_pows = order - 1                           # x^1 .. x^{order-1}; x^0 folded below

    # Fold the x^0 slab into a constant row: fold[o] = sum_i coeffs[o, i, 0].
    # This row is ALWAYS added (also for addbias=False) — it is part of the sum.
    fold = jnp.sum(coeffs[:, :, 0].astype(jnp.float32), axis=1)        # (out_dim,)
    if addbias and bias is not None:
        fold = fold + jnp.reshape(bias, (-1,)).astype(jnp.float32)
    b = jnp.pad(fold.reshape(1, out_dim), ((0, 0), (0, o_pad - out_dim)))

    i_pad = _round_up(input_dim, _LANES)
    k_packed = _round_up(max(n_pows * input_dim, 1), _LANES)
    packed = (n_pows == 0) or (k_packed < n_pows * i_pad)   # packing saves K lanes

    w_dtype = jnp.bfloat16 if use_bf16 else jnp.float32
    if packed:
        if n_pows > 0:
            c = jnp.transpose(coeffs[:, :, 1:], (2, 1, 0)).astype(jnp.float32)
            c = c.reshape(n_pows * input_dim, out_dim)
            c = jnp.pad(c, ((0, k_packed - n_pows * input_dim),
                            (0, o_pad - out_dim)))
        else:
            c = jnp.zeros((k_packed, o_pad), jnp.float32)
        k_pad = k_packed
    else:
        c = jnp.transpose(coeffs[:, :, 1:], (2, 1, 0)).astype(jnp.float32)
        c = jnp.pad(c, ((0, 0), (0, i_pad - input_dim), (0, o_pad - out_dim)))
        c = c.reshape(n_pows * i_pad, o_pad)
        k_pad = n_pows * i_pad

    return dict(c=c.astype(w_dtype), bias=b,
                out_dim=out_dim, input_dim=input_dim, order=order,
                n_pows=n_pows, i_pad=i_pad, o_pad=o_pad, k_pad=k_pad,
                packed=packed, use_bf16=use_bf16)


# ------------------------------ forward ------------------------------------


def taylor_kan_forward(x, params, *, row_tile=2048):
    """x: (..., input_dim) -> (..., out_dim)."""
    input_dim = params["input_dim"]
    out_dim = params["out_dim"]
    n_pows = params["n_pows"]
    i_pad = params["i_pad"]
    o_pad = params["o_pad"]
    k_pad = params["k_pad"]
    packed = params["packed"]
    use_bf16 = params["use_bf16"]
    c = params["c"]
    b = params["bias"]

    orig_shape = x.shape
    assert orig_shape[-1] == input_dim
    x2 = x.reshape(-1, input_dim)
    n = x2.shape[0]
    out_dtype = x.dtype

    # Pad N only to a sublane multiple; grid uses cdiv so the last row tile may
    # be ragged (garbage rows only affect their own, discarded, output rows).
    n_pad = _round_up(max(n, _SUBLANES), _SUBLANES)
    tn = min(_round_up(row_tile, _SUBLANES), n_pad)

    op_dtype = jnp.bfloat16 if use_bf16 else jnp.float32

    if packed:
        # Build [x^1 | ... | x^{order-1}] once in the XLA wrapper (no wasted
        # 128-lane padding per power slab for tiny input_dim).
        xf = x2.astype(jnp.float32)
        if n_pows > 0:
            pows = [xf]
            for _ in range(n_pows - 1):
                pows.append(pows[-1] * xf)
            feats = jnp.concatenate(pows, axis=-1)
        else:
            feats = jnp.zeros((n, 0), jnp.float32)
        feats = jnp.pad(feats, ((0, n_pad - n), (0, k_pad - feats.shape[1])))
        x_in = feats.astype(op_dtype)
        kernel = _make_packed_kernel()
        x_lanes = k_pad
    else:
        x_in = jnp.pad(x2, ((0, n_pad - n), (0, i_pad - input_dim)))
        if use_bf16:
            x_in = x_in.astype(jnp.bfloat16)     # halve x HBM streaming
        kernel = _make_slab_kernel(n_pows, i_pad, use_bf16)
        x_lanes = i_pad

    w_bytes = k_pad * o_pad * c.dtype.itemsize
    out_itemsize = jnp.dtype(out_dtype).itemsize

    def _vmem_needed(tn_, n_w_bufs):
        io = (2 * tn_ * x_lanes * x_in.dtype.itemsize
              + 2 * tn_ * o_pad * out_itemsize)
        w = n_w_bufs * (w_bytes + o_pad * 4)
        if packed:
            temps = tn_ * o_pad * 4                       # f32 dot result
        else:
            temps = tn_ * (3 * x_lanes + 2 * o_pad) * 4   # power chain + acc
        return io + w + temps

    cap = _vmem_cap_bytes()
    # Shrink the row tile if a tile would not fit the chip's VMEM budget.
    # TODO(synk): for weight matrices that alone exceed VMEM, add an o_pad grid
    # axis (output-N tiling) instead of shrinking tn further.
    while tn > _SUBLANES and int(1.25 * _vmem_needed(tn, 2)) > cap:
        tn = max(_SUBLANES, _round_up(tn // 2, _SUBLANES))

    grid = (pl.cdiv(n_pad, tn),)
    x_block = (tn, x_lanes)

    def _run(single_buffer_weights):
        if single_buffer_weights:
            # Constant index_map => no pipelining benefit; single-buffer the
            # resident weights/bias to halve their VMEM footprint.
            w_spec = pl.BlockSpec((k_pad, o_pad), lambda i: (0, 0),
                                  pipeline_mode=pl.Buffered(buffer_count=1))
            b_spec = pl.BlockSpec((1, o_pad), lambda i: (0, 0),
                                  pipeline_mode=pl.Buffered(buffer_count=1))
            n_w_bufs = 1
        else:
            w_spec = pl.BlockSpec((k_pad, o_pad), lambda i: (0, 0))
            b_spec = pl.BlockSpec((1, o_pad), lambda i: (0, 0))
            n_w_bufs = 2

        vmem_limit = int(min(max(int(1.5 * _vmem_needed(tn, n_w_bufs)),
                                 16 * 1024 * 1024), cap))

        return pl.pallas_call(
            kernel,
            out_shape=jax.ShapeDtypeStruct((n_pad, o_pad), out_dtype),
            grid_spec=pltpu.PrefetchScalarGridSpec(
                num_scalar_prefetch=0,
                grid=grid,
                in_specs=[pl.BlockSpec(x_block, lambda i: (i, 0)),  # row tile
                          w_spec,                                   # fused weights
                          b_spec],                                  # bias + folded x^0
                out_specs=pl.BlockSpec((tn, o_pad), lambda i: (i, 0)),
            ),
            compiler_params=pltpu.CompilerParams(
                dimension_semantics=("parallel",),   # row tiles across TCs (v7x)
                vmem_limit_bytes=vmem_limit,
            ),
        )(x_in, c, b)

    try:
        out = _run(True)          # single-buffered constant weights/bias
    except Exception:
        out = _run(False)         # fall back to default double-buffering

    out = out[:n, :out_dim]
    return out.reshape(orig_shape[:-1] + (out_dim,))


# ------------------------------ reference ----------------------------------


def taylor_kan_reference(x, coeffs, bias, *, addbias=True):
    """Pure-JAX reference mirroring the PyTorch loop."""
    out_dim, input_dim, order = coeffs.shape
    orig_shape = x.shape
    x2 = x.reshape(-1, input_dim).astype(jnp.float32)
    y = jnp.zeros((x2.shape[0], out_dim), dtype=jnp.float32)
    for i in range(order):
        term = (x2[:, None, :] ** i) * coeffs[:, :, i].astype(jnp.float32)
        y = y + term.sum(axis=-1)
    if addbias:
        y = y + bias.reshape(1, out_dim).astype(jnp.float32)
    return y.reshape(orig_shape[:-1] + (out_dim,)).astype(x.dtype)


if __name__ == "__main__":
    key = jax.random.PRNGKey(0)
    k_x, k_c, k_x2, k_c2, k_b2 = jax.random.split(key, 5)

    # --- packed-K fast path (input_dim << 128), matches the module's head ---
    input_dim, out_dim, order = 32, 16, 3
    batch, seq = 2, 8
    coeffs = jax.random.normal(k_c, (out_dim, input_dim, order), jnp.float32) * 0.01
    bias = jnp.zeros((1, out_dim), jnp.float32)
    x = jax.random.normal(k_x, (batch, seq, input_dim), jnp.float32)

    y_ref = taylor_kan_reference(x, coeffs, bias, addbias=True)

    params = prepare_taylor_kan_params(coeffs, bias, addbias=True, use_bf16=False)
    y = jax.block_until_ready(taylor_kan_forward(x, params))
    assert y.shape == (batch, seq, out_dim)
    assert jnp.allclose(y, y_ref, rtol=1e-5, atol=1e-5), "packed f32 path mismatch"

    # bf16 MXU operands / bf16 feature streaming (v6e/v7x fast path).
    params_bf16 = prepare_taylor_kan_params(coeffs, bias, addbias=True, use_bf16=True)
    y16 = jax.block_until_ready(taylor_kan_forward(x, params_bf16))
    assert jnp.allclose(y16, y_ref, rtol=5e-2, atol=5e-3), "packed bf16 path mismatch"

    # addbias=False still adds the folded x^0 constant row (correctness concern).
    params_nb = prepare_taylor_kan_params(coeffs, None, addbias=False, use_bf16=False)
    y_nb = jax.block_until_ready(taylor_kan_forward(x, params_nb))
    y_ref_nb = taylor_kan_reference(x, coeffs, bias, addbias=False)
    assert jnp.allclose(y_nb, y_ref_nb, rtol=1e-5, atol=1e-5), "no-bias path mismatch"

    # --- general slab path (input_dim multiple of 128) + ragged row tiling ---
    input_dim2, out_dim2, order2 = 128, 16, 3
    coeffs2 = jax.random.normal(k_c2, (out_dim2, input_dim2, order2), jnp.float32) * 0.01
    bias2 = jax.random.normal(k_b2, (1, out_dim2), jnp.float32) * 0.01
    x2 = jax.random.normal(k_x2, (3, 7, input_dim2), jnp.float32)   # n=21 -> ragged last tile
    params2 = prepare_taylor_kan_params(coeffs2, bias2, addbias=True, use_bf16=False)
    y2 = jax.block_until_ready(taylor_kan_forward(x2, params2, row_tile=16))
    y2_ref = taylor_kan_reference(x2, coeffs2, bias2, addbias=True)
    assert jnp.allclose(y2, y2_ref, rtol=1e-5, atol=1e-5), "slab path mismatch"

    print("KERNEL_OK")
</pallas_src>

<mosaic_0001>
module attributes {stable_mosaic.version = 11 : i64} {
  func.func @kernel(%arg0: i32, %arg1: memref<16x128xf32, #tpu.memory_space<vmem>>, %arg2: memref<128x128xf32, #tpu.memory_space<vmem>>, %arg3: memref<1x128xf32, #tpu.memory_space<vmem>>, %arg4: memref<16x128xf32, #tpu.memory_space<vmem>>) attributes {dimension_semantics = [#tpu.dimension_semantics<parallel>], iteration_bounds = array<i64: 1>, scalar_prefetch = 0 : i64, scratch_operands = 0 : i64, tpu.core_type = #tpu.core_type<tc>, window_params = [{transform_indices = @transform_0, window_bounds = array<i64: 16, 128>}, {pipeline_mode = #tpu.pipeline_mode<synchronous>, transform_indices = @transform_1, window_bounds = array<i64: 128, 128>}, {pipeline_mode = #tpu.pipeline_mode<synchronous>, transform_indices = @transform_2, window_bounds = array<i64: 1, 128>}, {transform_indices = @transform_3, window_bounds = array<i64: 16, 128>}]} {
    %c0 = arith.constant 0 : index
    %c0_0 = arith.constant 0 : index
    %0 = vector.load %arg1[%c0, %c0_0] : memref<16x128xf32, #tpu.memory_space<vmem>>, vector<16x128xf32>
    %c0_1 = arith.constant 0 : index
    %c0_2 = arith.constant 0 : index
    %1 = vector.load %arg2[%c0_1, %c0_2] : memref<128x128xf32, #tpu.memory_space<vmem>>, vector<128x128xf32>
    %cst = arith.constant dense<0.000000e+00> : vector<16x128xf32>
    %2 = tpu.matmul %0, %1, %cst {dimension_numbers = #tpu.dot_dimension_numbers<[1], [0], [0], [1], [0, 0, 1, 1], [], []>} : vector<16x128xf32>, vector<128x128xf32>, vector<16x128xf32> -> vector<16x128xf32>
    %c0_3 = arith.constant 0 : index
    %c0_4 = arith.constant 0 : index
    %3 = vector.load %arg3[%c0_3, %c0_4] : memref<1x128xf32, #tpu.memory_space<vmem>>, vector<1x128xf32>
    %4 = vector.broadcast %3 : vector<1x128xf32> to vector<16x128xf32>
    %5 = arith.addf %2, %4 : vector<16x128xf32>
    %c0_5 = arith.constant 0 : index
    %c0_6 = arith.constant 0 : index
    %6 = vector.load %arg4[%c0_5, %c0_6] : memref<16x128xf32, #tpu.memory_space<vmem>>, vector<16x128xf32>
    tpu.vector_store %arg4[%c0_5, %c0_6], %5 {strides = array<i32>} : memref<16x128xf32, #tpu.memory_space<vmem>>, vector<16x128xf32>,
    return
  }
  func.func @transform_0(%arg0: i32) -> (i32, i32) {
    %c0_i32 = arith.constant 0 : i32
    %c0_i32_0 = arith.constant 0 : i32
    return %arg0, %c0_i32 : i32, i32
  }
  func.func @transform_1(%arg0: i32) -> (i32, i32) {
    %c0_i32 = arith.constant 0 : i32
    %c0_i32_0 = arith.constant 0 : i32
    %c0_i32_1 = arith.constant 0 : i32
    return %c0_i32, %c0_i32_0 : i32, i32
  }
  func.func @transform_2(%arg0: i32) -> (i32, i32) {
    %c0_i32 = arith.constant 0 : i32
    %c0_i32_0 = arith.constant 0 : i32
    %c0_i32_1 = arith.constant 0 : i32
    return %c0_i32, %c0_i32_0 : i32, i32
  }
  func.func @transform_3(%arg0: i32) -> (i32, i32) {
    %c0_i32 = arith.constant 0 : i32
    %c0_i32_0 = arith.constant 0 : i32
    return %arg0, %c0_i32 : i32, i32
  }
}

module attributes {stable_mosaic.version = 11 : i64} {
  func.func @kernel(%arg0: i32, %arg1: memref<16x128xf32, #tpu.memory_space<vmem>>, %arg2: memref<128x128xf32, #tpu.memory_space<vmem>>, %arg3: memref<1x128xf32, #tpu.memory_space<vmem>>, %arg4: memref<16x128xf32, #tpu.memory_space<vmem>>) attributes {dimension_semantics = [#tpu.dimension_semantics<parallel>], iteration_bounds = array<i64: 1>, scalar_prefetch = 0 : i64, scratch_operands = 0 : i64, tpu.core_type = #tpu.core_type<tc>, window_params = [{transform_indices = @transform_0, window_bounds = array<i64: 16, 128>}, {pipeline_mode = #tpu.pipeline_mode<synchronous>, transform_indices = @transform_1, window_bounds = array<i64: 128, 128>}, {pipeline_mode = #tpu.pipeline_mode<synchronous>, transform_indices = @transform_2, window_bounds = array<i64: 1, 128>}, {transform_indices = @transform_3, window_bounds = array<i64: 16, 128>}]} {
    %c0 = arith.constant 0 : index
    %c0_0 = arith.constant 0 : index
    %0 = vector.load %arg1[%c0, %c0_0] : memref<16x128xf32, #tpu.memory_space<vmem>>, vector<16x128xf32>
    %c0_1 = arith.constant 0 : index
    %c0_2 = arith.constant 0 : index
    %1 = vector.load %arg2[%c0_1, %c0_2] : memref<128x128xf32, #tpu.memory_space<vmem>>, vector<128x128xf32>
    %cst = arith.constant dense<0.000000e+00> : vector<16x128xf32>
    %2 = tpu.matmul %0, %1, %cst {dimension_numbers = #tpu.dot_dimension_numbers<[1], [0], [0], [1], [0, 0, 1, 1], [], []>} : vector<16x128xf32>, vector<128x128xf32>, vector<16x128xf32> -> vector<16x128xf32>
    %c0_3 = arith.constant 0 : index
    %c0_4 = arith.constant 0 : index
    %3 = vector.load %arg3[%c0_3, %c0_4] : memref<1x128xf32, #tpu.memory_space<vmem>>, vector<1x128xf32>
    %4 = vector.broadcast %3 : vector<1x128xf32> to vector<16x128xf32>
    %5 = arith.addf %2, %4 : vector<16x128xf32>
    %c0_5 = arith.constant 0 : index
    %c0_6 = arith.constant 0 : index
    %6 = vector.load %arg4[%c0_5, %c0_6] : memref<16x128xf32, #tpu.memory_space<vmem>>, vector<16x128xf32>
    tpu.vector_store %arg4[%c0_5, %c0_6], %5 {strides = array<i32>} : memref<16x128xf32, #tpu.memory_space<vmem>>, vector<16x128xf32>,
    return
  }
  func.func @transform_0(%arg0: i32) -> (i32, i32) {
    %c0_i32 = arith.constant 0 : i32
    %c0_i32_0 = arith.constant 0 : i32
    return %arg0, %c0_i32 : i32, i32
  }
  func.func @transform_1(%arg0: i32) -> (i32, i32) {
    %c0_i32 = arith.constant 0 : i32
    %c0_i32_0 = arith.constant 0 : i32
    %c0_i32_1 = arith.constant 0 : i32
    return %c0_i32, %c0_i32_0 : i32, i32
  }
  func.func @transform_2(%arg0: i32) -> (i32, i32) {
    %c0_i32 = arith.constant 0 : i32
    %c0_i32_0 = arith.constant 0 : i32
    %c0_i32_1 = arith.constant 0 : i32
    return %c0_i32, %c0_i32_0 : i32, i32
  }
  func.func @transform_3(%arg0: i32) -> (i32, i32) {
    %c0_i32 = arith.constant 0 : i32
    %c0_i32_0 = arith.constant 0 : i32
    return %arg0, %c0_i32 : i32, i32
  }
}

</mosaic_0001>

<llo_original>
// kernel: tpu_custom_call.1
$region0: #{tpu_custom_call.1}
  #allocation0 [shape = 'u32[]', space=smem, size = 0x4, offset = 0x4, fixed_abs, tag = 'smem constant byte address 0x4 - core index']
  #allocation1 [shape = 'u32[144,128]{1,0:T(1,128)}', space=vmem, size = 0x12000, scoped, tag = 'internal scratch']
  %s0 = inlined_call_operand.hbm [shape: f32[16,128], index: 0, kind: input, shape index: {}]
  %s1 = inlined_call_operand.hbm [shape: f32[128,128], index: 1, kind: input, shape index: {}]
  %s2 = inlined_call_operand.vmem [shape: f32[1,128], index: 2, kind: input, shape index: {}]
  %s3 = inlined_call_operand.hbm [shape: f32[16,128], index: 3, kind: output, shape index: {}]
  %s4 = sld [smem:[#allocation0]]
  $region30: #{tpu_custom_call.1} parent=0
    _
  %s6 = ssub.s32 1, %s4
  %s7 = scalar_select 0, %s6, %s4
  $region1: #{tpu_custom_call.1} parent=0
    #allocation2 [shape = 'u8[8192]{0}', space=vmem, size = 0x2000, scoped, tag = 'input window, operand 0, single buffered']
    #allocation3 [shape = 's32[1]{0}', space=sflag, size = 0x4, scoped, tag = 'scoped memory for tpu_custom_call.1']
    #allocation4 [shape = 's32[1]{0}', space=sflag, size = 0x4, scoped, tag = 'scoped memory for tpu_custom_call.1']
    #allocation5 [shape = 'u8[65536]{0}', space=vmem, size = 0x10000, scoped, tag = 'input window, operand 1, single buffered']
    #allocation6 [shape = 's32[1]{0}', space=sflag, size = 0x4, scoped, tag = 'scoped memory for tpu_custom_call.1']
    #allocation7 [shape = 'u8[8192]{0}', space=vmem, size = 0x2000, scoped, tag = 'output window, operand 0, single buffered']
    %8 = vsyncpa [#allocation3], 0
    %9 = vsyncpa [#allocation6], 0
    %10 = vsyncpa [#allocation4], 0
    // Predicated region
    $region2: #{tpu_custom_call.1} parent=1 // pred_check
      _
    $region3: #{tpu_custom_call.1} parent=1 // pred_check_branch
      %12 = sbr.rel (0) target = $region5
    $region4: #{tpu_custom_call.1} parent=1 // pred_region
      %s14 = ssub.s32 256, 256
      %15 = vsyncadd [#allocation3], %s14
      %s16 = sshll.u32 [#allocation2], 4
      %s17 = int_to_ptr.vmem [resolvable:$true] %s16
      %22 = dma.hbm_to_vmem [thread:$0]  %s0, 256, %s17, [#allocation3], 128, 128, 8
    $region5: #{tpu_custom_call.1} parent=1 // pred_fallthru
      _
    // Predicated region
    $region6: #{tpu_custom_call.1} parent=1 // pred_check
      _
    $region7: #{tpu_custom_call.1} parent=1 // pred_check_branch
      %24 = sbr.rel (0) target = $region9
    $region8: #{tpu_custom_call.1} parent=1 // pred_region
      %s26 = ssub.s32 2048, 2048
      %27 = vsyncadd [#allocation6], %s26
      %s28 = sshll.u32 [#allocation5], 4
      %s29 = int_to_ptr.vmem [resolvable:$true] %s28
      %34 = dma.hbm_to_vmem [thread:$0]  %s1, 2048, %s29, [#allocation6], 128, 128, 8
    $region9: #{tpu_custom_call.1} parent=1 // pred_fallthru
      _
    // Predicated region
    $region10: #{tpu_custom_call.1} parent=1 // pred_check
      _
    $region11: #{tpu_custom_call.1} parent=1 // pred_check_branch
      %36 = sbr.rel (0) target = $region13
    $region12: #{tpu_custom_call.1} parent=1 // pred_region
      _
    $region13: #{tpu_custom_call.1} parent=1 // pred_fallthru
      _
    // Predicated region
    $region14: #{tpu_custom_call.1} parent=1 // pred_check
      _
    $region15: #{tpu_custom_call.1} parent=1 // pred_check_branch
      %38 = sbr.rel (0) target = $region17
    $region16: #{tpu_custom_call.1} parent=1 // pred_region
      %39 = dma.done [#allocation3], 256
    $region17: #{tpu_custom_call.1} parent=1 // pred_fallthru
      _
    // Predicated region
    $region18: #{tpu_custom_call.1} parent=1 // pred_check
      _
    $region19: #{tpu_custom_call.1} parent=1 // pred_check_branch
      %41 = sbr.rel (0) target = $region21
    $region20: #{tpu_custom_call.1} parent=1 // pred_region
      %42 = dma.done [#allocation6], 2048
    $region21: #{tpu_custom_call.1} parent=1 // pred_fallthru
      _
    %v43 = vld [vmem:[#allocation2] sm:$0xff]
    %v44 = vld [vmem:[#allocation2 + $0x8] sm:$0xff]
    %v45 = vld [vmem:[#allocation5] sm:$0xff]
    %v46 = vld [vmem:[#allocation5 + $0x8] sm:$0xff]
    %v47 = vld [vmem:[#allocation5 + $0x10] sm:$0xff]
    %v48 = vld [vmem:[#allocation5 + $0x18] sm:$0xff]
    %v49 = vld [vmem:[#allocation5 + $0x20] sm:$0xff]
    %v50 = vld [vmem:[#allocation5 + $0x28] sm:$0xff]
    %v51 = vld [vmem:[#allocation5 + $0x30] sm:$0xff]
    %v52 = vld [vmem:[#allocation5 + $0x38] sm:$0xff]
    %v53 = vld [vmem:[#allocation5 + $0x40] sm:$0xff]
    %v54 = vld [vmem:[#allocation5 + $0x48] sm:$0xff]
    %v55 = vld [vmem:[#allocation5 + $0x50] sm:$0xff]
    %v56 = vld [vmem:[#allocation5 + $0x58] sm:$0xff]
    %v57 = vld [vmem:[#allocation5 + $0x60] sm:$0xff]
    %v58 = vld [vmem:[#allocation5 + $0x68] sm:$0xff]
    %v59 = vld [vmem:[#allocation5 + $0x70] sm:$0xff]
    %v60 = vld [vmem:[#allocation5 + $0x78] sm:$0xff]
    %v61 = vld [vmem:[%s2] sm:$0x1]
    %v63 = vlaneseq
    %v64 = vshrl.u32 %v63, 7
    %v65 = vsub.s32 0, %v64
    %v66 = vrot.slane %v61, %v65
    %68 = vmatprep.subr.mxu0 0.0
    %69 = vmatpush1.msra.mxu0 %v45
    %70 = vmatprep.subr.mxu0 0.0
    %71 = vmatpush1.msra.mxu0 %v46
    %72 = vmatprep.subr.mxu0 0.0
    %73 = vmatpush1.msra.mxu0 %v47
    %74 = vmatprep.subr.mxu0 0.0
    %75 = vmatpush1.msra.mxu0 %v48
    %76 = vmatprep.subr.mxu0 0.0
    %77 = vmatpush1.msra.mxu0 %v49
    %78 = vmatprep.subr.mxu0 0.0
    %79 = vmatpush1.msra.mxu0 %v50
    %80 = vmatprep.subr.mxu0 0.0
    %81 = vmatpush1.msra.mxu0 %v51
    %82 = vmatprep.subr.mxu0 0.0
    %83 = vmatpush1.msra.mxu0 %v52
    %84 = vmatprep.subr.mxu0 0.0
    %85 = vmatpush1.msra.mxu0 %v53
    %86 = vmatprep.subr.mxu0 0.0
    %87 = vmatpush1.msra.mxu0 %v54
    %88 = vmatprep.subr.mxu0 0.0
    %89 = vmatpush1.msra.mxu0 %v55
    %90 = vmatprep.subr.mxu0 0.0
    %91 = vmatpush1.msra.mxu0 %v56
    %92 = vmatprep.subr.mxu0 0.0
    %93 = vmatpush1.msra.mxu0 %v57
    %94 = vmatprep.subr.mxu0 0.0
    %95 = vmatpush1.msra.mxu0 %v58
    %96 = vmatprep.subr.mxu0 0.0
    %97 = vmatpush1.msra.mxu0 %v59
    %98 = vmatprep.subr.mxu0 0.0
    %99 = vmatpush1.msra.mxu0 %v60
    %100 = vmatprep.subr.mxu0 0.0
    %101 = vmatpush1.msra.mxu0 0.0
    %102 = vmatprep.subr.mxu0 0.0
    %103 = vmatpush1.msra.mxu0 0.0
    %104 = vmatprep.subr.mxu0 0.0
    %105 = vmatpush1.msra.mxu0 0.0
    %106 = vmatprep.subr.mxu0 0.0
    %107 = vmatpush1.msra.mxu0 0.0
    %108 = vmatprep.subr.mxu0 0.0
    %109 = vmatpush1.msra.mxu0 0.0
    %110 = vmatprep.subr.mxu0 0.0
    %111 = vmatpush1.msra.mxu0 0.0
    %112 = vmatprep.subr.mxu0 0.0
    %113 = vmatpush1.msra.mxu0 0.0
    %114 = vmatprep.subr.mxu0 0.0
    %115 = vmatpush1.msra.mxu0 0.0
    %116 = vmatprep.subr.mxu0 0.0
    %117 = vmatpush1.msra.mxu0 0.0
    %118 = vmatprep.subr.mxu0 0.0
    %119 = vmatpush1.msra.mxu0 0.0
    %120 = vmatprep.subr.mxu0 0.0
    %121 = vmatpush1.msra.mxu0 0.0
    %122 = vmatprep.subr.mxu0 0.0
    %123 = vmatpush1.msra.mxu0 0.0
    %124 = vmatprep.subr.mxu0 0.0
    %125 = vmatpush1.msra.mxu0 0.0
    %126 = vmatprep.subr.mxu0 0.0
    %127 = vmatpush1.msra.mxu0 0.0
    %128 = vmatprep.subr.mxu0 0.0
    %129 = vmatpush1.msra.mxu0 0.0
    %130 = vmatprep.subr.mxu0 0.0
    %131 = vmatpush1.msra.mxu0 0.0
    %132 = vmatprep.mubr.f32.mxu0 0.0
    %133 = vmatmul.mubr.f32.gmra.mrb[0].mxu0 %v43
    %v134 = vpop.f32.mrb[0].mxu0
    %v135 = vadd.f32 %v66, %v134
    %v136 = vpop.f32.mrb[0].mxu0
    %137 = vmatprep.mubr.f32.mxu0 0.0
    %138 = vmatmul.mubr.f32.gmra.mrb[0].mxu0 %v44
    %v139 = vpop.f32.mrb[0].mxu0
    %v140 = vadd.f32 %v66, %v139
    %v141 = vpop.f32.mrb[0].mxu0
    %142 = vdwg.mxu0
    %143 = vst [vmem:[#allocation7] sm:$0xff] %v135
    %144 = vst [vmem:[#allocation7 + $0x8] sm:$0xff] %v140
    // Predicated region
    $region22: #{tpu_custom_call.1} parent=1 // pred_check
      _
    $region23: #{tpu_custom_call.1} parent=1 // pred_check_branch
      %146 = sbr.rel (0) target = $region25
    $region24: #{tpu_custom_call.1} parent=1 // pred_region
      %s148 = ssub.s32 256, 256
      %149 = vsyncadd [#allocation4], %s148
      %s150 = sshll.u32 [#allocation7], 4
      %s151 = int_to_ptr.vmem [resolvable:$true] %s150
      %156 = dma.vmem_to_hbm [thread:$0]  %s151, 256, %s3, [#allocation4], 128, 128, 8
    $region25: #{tpu_custom_call.1} parent=1 // pred_fallthru
      _
    // Predicated region
    $region26: #{tpu_custom_call.1} parent=1 // pred_check
      _
    $region27: #{tpu_custom_call.1} parent=1 // pred_check_branch
      %158 = sbr.rel (0) target = $region29
    $region28: #{tpu_custom_call.1} parent=1 // pred_region
      %159 = dma.done [#allocation4], 256
    $region29: #{tpu_custom_call.1} parent=1 // pred_fallthru
      _
    %160 = vsyncpa [#allocation3], 1
    %161 = vsyncpa [#allocation6], 1
    %162 = vsyncpa [#allocation4], 1

// kernel: tpu_custom_call.1
$region0: #{tpu_custom_call.1}
  #allocation0 [shape = 'u32[]', space=smem, size = 0x4, offset = 0x4, fixed_abs, tag = 'smem constant byte address 0x4 - core index']
  #allocation1 [shape = 'u32[144,128]{1,0:T(1,128)}', space=vmem, size = 0x12000, scoped, tag = 'internal scratch']
  %s0 = inlined_call_operand.hbm [shape: f32[16,128], index: 0, kind: input, shape index: {}]
  %s1 = inlined_call_operand.hbm [shape: f32[128,128], index: 1, kind: input, shape index: {}]
  %s2 = inlined_call_operand.vmem [shape: f32[1,128], index: 2, kind: input, shape index: {}]
  %s3 = inlined_call_operand.hbm [shape: f32[16,128], index: 3, kind: output, shape index: {}]
  %s4 = sld [smem:[#allocation0]]
  $region30: #{tpu_custom_call.1} parent=0
    _
  %s6 = ssub.s32 1, %s4
  %s7 = scalar_select 0, %s6, %s4
  $region1: #{tpu_custom_call.1} parent=0
    #allocation2 [shape = 'u8[8192]{0}', space=vmem, size = 0x2000, scoped, tag = 'input window, operand 0, single buffered']
    #allocation3 [shape = 's32[1]{0}', space=sflag, size = 0x4, scoped, tag = 'scoped memory for tpu_custom_call.1']
    #allocation4 [shape = 's32[1]{0}', space=sflag, size = 0x4, scoped, tag = 'scoped memory for tpu_custom_call.1']
    #allocation5 [shape = 'u8[65536]{0}', space=vmem, size = 0x10000, scoped, tag = 'input window, operand 1, single buffered']
    #allocation6 [shape = 's32[1]{0}', space=sflag, size = 0x4, scoped, tag = 'scoped memory for tpu_custom_call.1']
    #allocation7 [shape = 'u8[8192]{0}', space=vmem, size = 0x2000, scoped, tag = 'output window, operand 0, single buffered']
    %8 = vsyncpa [#allocation3], 0
    %9 = vsyncpa [#allocation6], 0
    %10 = vsyncpa [#allocation4], 0
    // Predicated region
    $region2: #{tpu_custom_call.1} parent=1 // pred_check
      _
    $region3: #{tpu_custom_call.1} parent=1 // pred_check_branch
      %12 = sbr.rel (0) target = $region5
    $region4: #{tpu_custom_call.1} parent=1 // pred_region
      %s14 = ssub.s32 256, 256
      %15 = vsyncadd [#allocation3], %s14
      %s16 = sshll.u32 [#allocation2], 4
      %s17 = int_to_ptr.vmem [resolvable:$true] %s16
      %22 = dma.hbm_to_vmem [thread:$0]  %s0, 256, %s17, [#allocation3], 128, 128, 8
    $region5: #{tpu_custom_call.1} parent=1 // pred_fallthru
      _
    // Predicated region
    $region6: #{tpu_custom_call.1} parent=1 // pred_check
      _
    $region7: #{tpu_custom_call.1} parent=1 // pred_check_branch
      %24 = sbr.rel (0) target = $region9
    $region8: #{tpu_custom_call.1} parent=1 // pred_region
      %s26 = ssub.s32 2048, 2048
      %27 = vsyncadd [#allocation6], %s26
      %s28 = sshll.u32 [#allocation5], 4
      %s29 = int_to_ptr.vmem [resolvable:$true] %s28
      %34 = dma.hbm_to_vmem [thread:$0]  %s1, 2048, %s29, [#allocation6], 128, 128, 8
    $region9: #{tpu_custom_call.1} parent=1 // pred_fallthru
      _
    // Predicated region
    $region10: #{tpu_custom_call.1} parent=1 // pred_check
      _
    $region11: #{tpu_custom_call.1} parent=1 // pred_check_branch
      %36 = sbr.rel (0) target = $region13
    $region12: #{tpu_custom_call.1} parent=1 // pred_region
      _
    $region13: #{tpu_custom_call.1} parent=1 // pred_fallthru
      _
    // Predicated region
    $region14: #{tpu_custom_call.1} parent=1 // pred_check
      _
    $region15: #{tpu_custom_call.1} parent=1 // pred_check_branch
      %38 = sbr.rel (0) target = $region17
    $region16: #{tpu_custom_call.1} parent=1 // pred_region
      %39 = dma.done [#allocation3], 256
    $region17: #{tpu_custom_call.1} parent=1 // pred_fallthru
      _
    // Predicated region
    $region18: #{tpu_custom_call.1} parent=1 // pred_check
      _
    $region19: #{tpu_custom_call.1} parent=1 // pred_check_branch
      %41 = sbr.rel (0) target = $region21
    $region20: #{tpu_custom_call.1} parent=1 // pred_region
      %42 = dma.done [#allocation6], 2048
    $region21: #{tpu_custom_call.1} parent=1 // pred_fallthru
      _
    %v43 = vld [vmem:[#allocation2] sm:$0xff]
    %v44 = vld [vmem:[#allocation2 + $0x8] sm:$0xff]
    %v45 = vld [vmem:[#allocation5] sm:$0xff]
    %v46 = vld [vmem:[#allocation5 + $0x8] sm:$0xff]
    %v47 = vld [vmem:[#allocation5 + $0x10] sm:$0xff]
    %v48 = vld [vmem:[#allocation5 + $0x18] sm:$0xff]
    %v49 = vld [vmem:[#allocation5 + $0x20] sm:$0xff]
    %v50 = vld [vmem:[#allocation5 + $0x28] sm:$0xff]
    %v51 = vld [vmem:[#allocation5 + $0x30] sm:$0xff]
    %v52 = vld [vmem:[#allocation5 + $0x38] sm:$0xff]
    %v53 = vld [vmem:[#allocation5 + $0x40] sm:$0xff]
    %v54 = vld [vmem:[#allocation5 + $0x48] sm:$0xff]
    %v55 = vld [vmem:[#allocation5 + $0x50] sm:$0xff]
    %v56 = vld [vmem:[#allocation5 + $0x58] sm:$0xff]
    %v57 = vld [vmem:[#allocation5 + $0x60] sm:$0xff]
    %v58 = vld [vmem:[#allocation5 + $0x68] sm:$0xff]
    %v59 = vld [vmem:[#allocation5 + $0x70] sm:$0xff]
    %v60 = vld [vmem:[#allocation5 + $0x78] sm:$0xff]
    %v61 = vld [vmem:[%s2] sm:$0x1]
    %v63 = vlaneseq
    %v64 = vshrl.u32 %v63, 7
    %v65 = vsub.s32 0, %v64
    %v66 = vrot.slane %v61, %v65
    %68 = vmatprep.subr.mxu0 0.0
    %69 = vmatpush1.msra.mxu0 %v45
    %70 = vmatprep.subr.mxu0 0.0
    %71 = vmatpush1.msra.mxu0 %v46
    %72 = vmatprep.subr.mxu0 0.0
    %73 = vmatpush1.msra.mxu0 %v47
    %74 = vmatprep.subr.mxu0 0.0
    %75 = vmatpush1.msra.mxu0 %v48
    %76 = vmatprep.subr.mxu0 0.0
    %77 = vmatpush1.msra.mxu0 %v49
    %78 = vmatprep.subr.mxu0 0.0
    %79 = vmatpush1.msra.mxu0 %v50
    %80 = vmatprep.subr.mxu0 0.0
    %81 = vmatpush1.msra.mxu0 %v51
    %82 = vmatprep.subr.mxu0 0.0
    %83 = vmatpush1.msra.mxu0 %v52
    %84 = vmatprep.subr.mxu0 0.0
    %85 = vmatpush1.msra.mxu0 %v53
    %86 = vmatprep.subr.mxu0 0.0
    %87 = vmatpush1.msra.mxu0 %v54
    %88 = vmatprep.subr.mxu0 0.0
    %89 = vmatpush1.msra.mxu0 %v55
    %90 = vmatprep.subr.mxu0 0.0
    %91 = vmatpush1.msra.mxu0 %v56
    %92 = vmatprep.subr.mxu0 0.0
    %93 = vmatpush1.msra.mxu0 %v57
    %94 = vmatprep.subr.mxu0 0.0
    %95 = vmatpush1.msra.mxu0 %v58
    %96 = vmatprep.subr.mxu0 0.0
    %97 = vmatpush1.msra.mxu0 %v59
    %98 = vmatprep.subr.mxu0 0.0
    %99 = vmatpush1.msra.mxu0 %v60
    %100 = vmatprep.subr.mxu0 0.0
    %101 = vmatpush1.msra.mxu0 0.0
    %102 = vmatprep.subr.mxu0 0.0
    %103 = vmatpush1.msra.mxu0 0.0
    %104 = vmatprep.subr.mxu0 0.0
    %105 = vmatpush1.msra.mxu0 0.0
    %106 = vmatprep.subr.mxu0 0.0
    %107 = vmatpush1.msra.mxu0 0.0
    %108 = vmatprep.subr.mxu0 0.0
    %109 = vmatpush1.msra.mxu0 0.0
    %110 = vmatprep.subr.mxu0 0.0
    %111 = vmatpush1.msra.mxu0 0.0
    %112 = vmatprep.subr.mxu0 0.0
    %113 = vmatpush1.msra.mxu0 0.0
    %114 = vmatprep.subr.mxu0 0.0
    %115 = vmatpush1.msra.mxu0 0.0
    %116 = vmatprep.subr.mxu0 0.0
    %117 = vmatpush1.msra.mxu0 0.0
    %118 = vmatprep.subr.mxu0 0.0
    %119 = vmatpush1.msra.mxu0 0.0
    %120 = vmatprep.subr.mxu0 0.0
    %121 = vmatpush1.msra.mxu0 0.0
    %122 = vmatprep.subr.mxu0 0.0
    %123 = vmatpush1.msra.mxu0 0.0
    %124 = vmatprep.subr.mxu0 0.0
    %125 = vmatpush1.msra.mxu0 0.0
    %126 = vmatprep.subr.mxu0 0.0
    %127 = vmatpush1.msra.mxu0 0.0
    %128 = vmatprep.subr.mxu0 0.0
    %129 = vmatpush1.msra.mxu0 0.0
    %130 = vmatprep.subr.mxu0 0.0
    %131 = vmatpush1.msra.mxu0 0.0
    %132 = vmatprep.mubr.f32.mxu0 0.0
    %133 = vmatmul.mubr.f32.gmra.mrb[0].mxu0 %v43
    %v134 = vpop.f32.mrb[0].mxu0
    %v135 = vadd.f32 %v66, %v134
    %v136 = vpop.f32.mrb[0].mxu0
    %137 = vmatprep.mubr.f32.mxu0 0.0
    %138 = vmatmul.mubr.f32.gmra.mrb[0].mxu0 %v44
    %v139 = vpop.f32.mrb[0].mxu0
    %v140 = vadd.f32 %v66, %v139
    %v141 = vpop.f32.mrb[0].mxu0
    %142 = vdwg.mxu0
    %143 = vst [vmem:[#allocation7] sm:$0xff] %v135
    %144 = vst [vmem:[#allocation7 + $0x8] sm:$0xff] %v140
    // Predicated region
    $region22: #{tpu_custom_call.1} parent=1 // pred_check
      _
    $region23: #{tpu_custom_call.1} parent=1 // pred_check_branch
      %146 = sbr.rel (0) target = $region25
    $region24: #{tpu_custom_call.1} parent=1 // pred_region
      %s148 = ssub.s32 256, 256
      %149 = vsyncadd [#allocation4], %s148
      %s150 = sshll.u32 [#allocation7], 4
      %s151 = int_to_ptr.vmem [resolvable:$true] %s150
      %156 = dma.vmem_to_hbm [thread:$0]  %s151, 256, %s3, [#allocation4], 128, 128, 8
    $region25: #{tpu_custom_call.1} parent=1 // pred_fallthru
      _
    // Predicated region
    $region26: #{tpu_custom_call.1} parent=1 // pred_check
      _
    $region27: #{tpu_custom_call.1} parent=1 // pred_check_branch
      %158 = sbr.rel (0) target = $region29
    $region28: #{tpu_custom_call.1} parent=1 // pred_region
      %159 = dma.done [#allocation4], 256
    $region29: #{tpu_custom_call.1} parent=1 // pred_fallthru
      _
    %160 = vsyncpa [#allocation3], 1
    %161 = vsyncpa [#allocation6], 1
    %162 = vsyncpa [#allocation4], 1

</llo_original>
